<compile_context>
chip_gen: v5e
topology: v5e:2x2
jax: 0.10.0
libtpu: 0.0.40
codegen_flags: <defaults>
</compile_context>

<pallas_src>
import functools

import jax
import jax.numpy as jnp
from jax.experimental import pallas as pl
from jax.experimental.pallas import tpu as pltpu


def _bn_act_kernel(x_ref, scale_ref, bias_ref, o_ref):
    # x_ref:     (ROW_TILE, LANE_TILE)  tile of the flattened feature map
    # scale_ref: (ROW_TILE, 1)          folded BN scale  (gamma / sqrt(var+eps))
    # bias_ref:  (ROW_TILE, 1)          folded BN bias   (beta - mean * scale)
    # o_ref:     (ROW_TILE, LANE_TILE)
    x = x_ref[...].astype(jnp.float32)
    y = x * scale_ref[...] + bias_ref[...]
    o_ref[...] = jnp.maximum(y, 0.0).astype(o_ref.dtype)  # ReLU activation


def _round_up(x, m):
    return ((x + m - 1) // m) * m


def _pick_tile(total, unit, max_tile):
    """Largest multiple of `unit` dividing round_up(total, unit), <= max_tile.

    Guarantees result >= unit, so block shapes stay (8,128)-aligned while the
    (possibly unaligned) array edge is handled by Pallas's masked edge tiles.
    """
    padded = _round_up(total, unit)
    m = padded // unit
    best = 1
    d = 1
    while d * d <= m:
        if m % d == 0:
            for cand in (d, m // d):
                if cand * unit <= max_tile and cand > best:
                    best = cand
        d += 1
    return best * unit


@functools.partial(jax.jit, static_argnames=("eps",))
def activate_feature(x_nchw, gamma, beta, running_mean, running_var, eps=1e-5):
    """activation(BatchNorm2d(x)) with inference-mode batch norm.

    x_nchw: (N, C, H, W)
    gamma, beta, running_mean, running_var: (C,)
    returns: (N, C, H, W), same dtype as x_nchw
    """
    N, C, H, W = x_nchw.shape
    rows = N * C
    cols = H * W

    # --- Glue: fold BN statistics into per-row affine params (tiny arrays). ---
    scale_c = gamma.astype(jnp.float32) * jax.lax.rsqrt(
        running_var.astype(jnp.float32) + eps)                       # (C,)
    bias_c = beta.astype(jnp.float32) - running_mean.astype(jnp.float32) * scale_c
    scale2d = jnp.tile(scale_c, N).reshape(rows, 1)                  # (N*C, 1)
    bias2d = jnp.tile(bias_c, N).reshape(rows, 1)                    # (N*C, 1)

    # --- Glue: transpose-free view NCHW -> (N*C, H*W). ---
    x_flat = x_nchw.reshape(rows, cols)

    # --- Tile selection: lane-dense blocks, ~4 MiB f32 budget per block. ---
    budget_elems = 1 << 20                                           # 4 MiB of f32
    lane_tile = _pick_tile(cols, 128, 8192)
    max_rows = max(8, (budget_elems // lane_tile) // 8 * 8)
    row_tile = _pick_tile(rows, 8, max_rows)

    grid = (pl.cdiv(rows, row_tile), pl.cdiv(cols, lane_tile))

    out_flat = pl.pallas_call(
        _bn_act_kernel,
        out_shape=jax.ShapeDtypeStruct((rows, cols), x_flat.dtype),
        grid_spec=pltpu.PrefetchScalarGridSpec(
            num_scalar_prefetch=0,
            grid=grid,
            in_specs=[
                pl.BlockSpec((row_tile, lane_tile), lambda r, s: (r, s)),
                pl.BlockSpec((row_tile, 1), lambda r, s: (r, 0)),
                pl.BlockSpec((row_tile, 1), lambda r, s: (r, 0)),
            ],
            out_specs=pl.BlockSpec((row_tile, lane_tile), lambda r, s: (r, s)),
        ),
        compiler_params=pltpu.CompilerParams(
            dimension_semantics=("parallel", "parallel"),
            vmem_limit_bytes=48 * 1024 * 1024,
        ),
    )(x_flat, scale2d, bias2d)

    # --- Glue: free view back to NCHW (no padding was added). ---
    return out_flat.reshape(N, C, H, W)


def _reference(x, gamma, beta, mean, var, eps=1e-5):
    scale = gamma / jnp.sqrt(var + eps)
    bias = beta - mean * scale
    return jnp.maximum(
        x * scale[None, :, None, None] + bias[None, :, None, None], 0.0)


if __name__ == "__main__":
    # Small shapes consistent with a conv-net feature map.
    N, C, H, W = 2, 4, 16, 16
    key = jax.random.PRNGKey(0)
    kx, kg, kb, km, kv = jax.random.split(key, 5)

    x = jax.random.normal(kx, (N, C, H, W), dtype=jnp.float32)
    gamma = 1.0 + 0.1 * jax.random.normal(kg, (C,), dtype=jnp.float32)
    beta = 0.1 * jax.random.normal(kb, (C,), dtype=jnp.float32)
    running_mean = 0.05 * jax.random.normal(km, (C,), dtype=jnp.float32)
    running_var = 1.0 + 0.1 * jax.random.uniform(kv, (C,), dtype=jnp.float32)

    out = jax.block_until_ready(
        activate_feature(x, gamma, beta, running_mean, running_var))
    ref = _reference(x, gamma, beta, running_mean, running_var)
    assert out.shape == (N, C, H, W)
    assert jnp.allclose(out, ref, atol=1e-5, rtol=1e-5)

    # Also exercise a non-(8,128)-aligned shape to verify the masked-edge path.
    N2, C2, H2, W2 = 2, 3, 7, 9
    x2 = jax.random.normal(kx, (N2, C2, H2, W2), dtype=jnp.float32)
    g2 = 1.0 + 0.1 * jax.random.normal(kg, (C2,), dtype=jnp.float32)
    b2 = 0.1 * jax.random.normal(kb, (C2,), dtype=jnp.float32)
    m2 = 0.05 * jax.random.normal(km, (C2,), dtype=jnp.float32)
    v2 = 1.0 + 0.1 * jax.random.uniform(kv, (C2,), dtype=jnp.float32)
    out2 = jax.block_until_ready(activate_feature(x2, g2, b2, m2, v2))
    ref2 = _reference(x2, g2, b2, m2, v2)
    assert jnp.allclose(out2, ref2, atol=1e-5, rtol=1e-5)

    # TODO(synk): `forward` is abstract (raises NotImplementedError) — only
    # `activate_feature` is implemented; activation choice fixed to ReLU.
    print("KERNEL_OK")
</pallas_src>

<mosaic_0001>
module attributes {stable_mosaic.version = 11 : i64} {
  func.func @_bn_act_kernel(%arg0: i32, %arg1: i32, %arg2: memref<8x256xf32, #tpu.memory_space<vmem>>, %arg3: memref<8x1xf32, #tpu.memory_space<vmem>>, %arg4: memref<8x1xf32, #tpu.memory_space<vmem>>, %arg5: memref<8x256xf32, #tpu.memory_space<vmem>>) attributes {dimension_semantics = [#tpu.dimension_semantics<parallel>, #tpu.dimension_semantics<parallel>], iteration_bounds = array<i64: 1, 1>, scalar_prefetch = 0 : i64, scratch_operands = 0 : i64, tpu.core_type = #tpu.core_type<tc>, window_params = [{transform_indices = @transform_0, window_bounds = array<i64: 8, 256>}, {transform_indices = @transform_1, window_bounds = array<i64: 8, 1>}, {transform_indices = @transform_2, window_bounds = array<i64: 8, 1>}, {transform_indices = @transform_3, window_bounds = array<i64: 8, 256>}]} {
    %c0 = arith.constant 0 : index
    %c0_0 = arith.constant 0 : index
    %0 = vector.load %arg2[%c0, %c0_0] : memref<8x256xf32, #tpu.memory_space<vmem>>, vector<8x256xf32>
    %c0_1 = arith.constant 0 : index
    %c0_2 = arith.constant 0 : index
    %1 = vector.load %arg3[%c0_1, %c0_2] : memref<8x1xf32, #tpu.memory_space<vmem>>, vector<8x1xf32>
    %2 = vector.broadcast %1 : vector<8x1xf32> to vector<8x256xf32>
    %3 = arith.mulf %0, %2 : vector<8x256xf32>
    %c0_3 = arith.constant 0 : index
    %c0_4 = arith.constant 0 : index
    %4 = vector.load %arg4[%c0_3, %c0_4] : memref<8x1xf32, #tpu.memory_space<vmem>>, vector<8x1xf32>
    %5 = vector.broadcast %4 : vector<8x1xf32> to vector<8x256xf32>
    %6 = arith.addf %3, %5 : vector<8x256xf32>
    %cst = arith.constant 0.000000e+00 : f32
    %7 = vector.broadcast %cst : f32 to vector<8x256xf32>
    %8 = arith.maximumf %6, %7 : vector<8x256xf32>
    %c0_5 = arith.constant 0 : index
    %c0_6 = arith.constant 0 : index
    %9 = vector.load %arg5[%c0_5, %c0_6] : memref<8x256xf32, #tpu.memory_space<vmem>>, vector<8x256xf32>
    tpu.vector_store %arg5[%c0_5, %c0_6], %8 {strides = array<i32>} : memref<8x256xf32, #tpu.memory_space<vmem>>, vector<8x256xf32>,
    return
  }
  func.func @transform_0(%arg0: i32, %arg1: i32) -> (i32, i32) {
    %c0_i32 = arith.constant 0 : i32
    return %arg0, %arg1 : i32, i32
  }
  func.func @transform_1(%arg0: i32, %arg1: i32) -> (i32, i32) {
    %c0_i32 = arith.constant 0 : i32
    %c0_i32_0 = arith.constant 0 : i32
    return %arg0, %c0_i32 : i32, i32
  }
  func.func @transform_2(%arg0: i32, %arg1: i32) -> (i32, i32) {
    %c0_i32 = arith.constant 0 : i32
    %c0_i32_0 = arith.constant 0 : i32
    return %arg0, %c0_i32 : i32, i32
  }
  func.func @transform_3(%arg0: i32, %arg1: i32) -> (i32, i32) {
    %c0_i32 = arith.constant 0 : i32
    return %arg0, %arg1 : i32, i32
  }
}

</mosaic_0001>

<llo_original>
// kernel: tile.18
$region0: #{tile.18}
  #allocation0 [shape = 's32[1]{0}', space=sflag, size = 0x4, scoped, tag = 'scoped memory for tile.18']
  %s0 = inlined_call_operand.vmem [shape: f32[4], index: 0, kind: input, shape index: {}]
  %s1 = inlined_call_operand.vmem [shape: f32[2,4], index: 1, kind: output, shape index: {}]
  // Predicated region
  $region2: #{tile.18} parent=0 // pred_check
    _
  $region3: #{tile.18} parent=0 // pred_check_branch
    %3 = sbr.rel (0) target = $region5
  $region4: #{tile.18} parent=0 // pred_region
    _
  $region5: #{tile.18} parent=0 // pred_fallthru
    _
  %v4 = vld [vmem:[%s0] ss:$0 sm:$0xff]
  %5 = vst [vmem:[%s1] sm:$0x3] %v4

// kernel: tile.0
$region0: #{tile.0}
  %s0 = inlined_call_operand.vmem [shape: f32[2,4], index: 0, kind: input, shape index: {}]
  %s1 = inlined_call_operand.vmem [shape: f32[8,1], index: 1, kind: output, shape index: {}]
  $region1: #{tile.0} parent=0
    #allocation0 [shape = 'u8[4096]{0}', space=vmem, size = 0x1000, scoped, tag = 'scoped mem for input reshape']
    %s3 = ssub.s32 4, 1
    %v4 = vld [vmem:[%s0] sm:%s3]
    %5 = vst [vmem:[#allocation0] sm:%s3] %v4
    %v6 = vld [vmem:[#allocation0] sm:$0x3]
    %vm7 = vcmask 7168
    %8 = vst.msk [vmem:[%s1] ss:$4 sm:$0x3] %vm7, %v6
    %v9 = vld [vmem:[#allocation0] sm:$0x3]
    %10 = vrot.lane.b32.xlu0 %v9, 127
    %v11 = vpop.permute.xlu0 %10
    %vm12 = vcmask 7168
    %s13 = scalar_lea.vmem %s1, 1
    %14 = vst.msk [vmem:[%s13] ss:$4 sm:$0x3] %vm12, %v11
    %v15 = vld [vmem:[#allocation0] sm:$0x3]
    %16 = vrot.lane.b32.xlu0 %v15, 126
    %v17 = vpop.permute.xlu0 %16
    %vm18 = vcmask 7168
    %s19 = scalar_lea.vmem %s1, 2
    %20 = vst.msk [vmem:[%s19] ss:$4 sm:$0x3] %vm18, %v17
    %v21 = vld [vmem:[#allocation0] sm:$0x3]
    %22 = vrot.lane.b32.xlu0 %v21, 125
    %v23 = vpop.permute.xlu0 %22
    %vm24 = vcmask 7168
    %s25 = scalar_lea.vmem %s1, 3
    %26 = vst.msk [vmem:[%s25] ss:$4 sm:$0x3] %vm24, %v23

// kernel: activate_feature.1
$region0: #{activate_feature.1}
  #allocation0 [shape = 'u32[]', space=smem, size = 0x4, offset = 0x4, fixed_abs, tag = 'smem constant byte address 0x4 - core index']
  #allocation1 [shape = 'u32[72,128]{1,0:T(1,128)}', space=vmem, size = 0x9000, scoped, tag = 'internal scratch']
  %s0 = inlined_call_operand.vmem [shape: f32[8,256], index: 0, kind: input, shape index: {}]
  %s1 = inlined_call_operand.vmem [shape: f32[8,1], index: 1, kind: input, shape index: {}]
  %s2 = inlined_call_operand.vmem [shape: f32[8,1], index: 2, kind: input, shape index: {}]
  %s3 = inlined_call_operand.vmem [shape: f32[8,256], index: 3, kind: output, shape index: {}]
  %s4 = sld [smem:[#allocation0]]
  $region22: #{activate_feature.1} parent=0
    _
  %s6 = ssub.s32 1, %s4
  %s7 = scalar_select 0, %s6, %s4
  // Predicated region
  $region2: #{activate_feature.1} parent=0 // pred_check
    _
  $region3: #{activate_feature.1} parent=0 // pred_check_branch
    %9 = sbr.rel (0) target = $region5
  $region4: #{activate_feature.1} parent=0 // pred_region
    _
  $region5: #{activate_feature.1} parent=0 // pred_fallthru
    _
  // Predicated region
  $region6: #{activate_feature.1} parent=0 // pred_check
    _
  $region7: #{activate_feature.1} parent=0 // pred_check_branch
    %11 = sbr.rel (0) target = $region9
  $region8: #{activate_feature.1} parent=0 // pred_region
    _
  $region9: #{activate_feature.1} parent=0 // pred_fallthru
    _
  // Predicated region
  $region10: #{activate_feature.1} parent=0 // pred_check
    _
  $region11: #{activate_feature.1} parent=0 // pred_check_branch
    %13 = sbr.rel (0) target = $region13
  $region12: #{activate_feature.1} parent=0 // pred_region
    _
  $region13: #{activate_feature.1} parent=0 // pred_fallthru
    _
  %v14 = vld [vmem:[%s0] sm:$0xff]
  %v15 = vld [vmem:[%s0 + $0x8] sm:$0xff]
  %v16 = vld [vmem:[%s1] sm:$0xff]
  %18 = vset.pattern.permute.xlu0 0
  %19 = vperm.xlu0 %18, %v16
  %v20 = vpop.permute.xlu0 %19
  %v22 = vmul.f32 %v14, %v20
  %v23 = vmul.f32 %v15, %v20
  %v24 = vld [vmem:[%s2] sm:$0xff]
  %26 = vset.pattern.permute.xlu0 0
  %27 = vperm.xlu0 %26, %v24
  %v28 = vpop.permute.xlu0 %27
  %v30 = vadd.f32 %v22, %v28
  %v31 = vadd.f32 %v23, %v28
  %v32 = vmax.f32 %v30, 0.0
  %v33 = vmax.f32 %v31, 0.0
  %34 = vst [vmem:[%s3] sm:$0xff] %v32
  %35 = vst [vmem:[%s3 + $0x8] sm:$0xff] %v33
  // Predicated region
  $region14: #{activate_feature.1} parent=0 // pred_check
    _
  $region15: #{activate_feature.1} parent=0 // pred_check_branch
    %37 = sbr.rel (0) target = $region17
  $region16: #{activate_feature.1} parent=0 // pred_region
    _
  $region17: #{activate_feature.1} parent=0 // pred_fallthru
    _
  // Predicated region
  $region18: #{activate_feature.1} parent=0 // pred_check
    _
  $region19: #{activate_feature.1} parent=0 // pred_check_branch
    %39 = sbr.rel (0) target = $region21
  $region20: #{activate_feature.1} parent=0 // pred_region
    _
  $region21: #{activate_feature.1} parent=0 // pred_fallthru
    _

</llo_original>
